<compile_context>
chip_gen: v6e
topology: v6e:2x2x1
jax: 0.10.0
libtpu: 0.0.40
codegen_flags: <defaults>
</compile_context>

<pallas_src>
import jax
import jax.numpy as jnp
from jax.experimental import pallas as pl
from jax.experimental.pallas import tpu as pltpu


def _round_up(a, b):
    return ((a + b - 1) // b) * b


# --------------------------------------------------------------------------
# Fused Flow-step kernel:
#   x1 = x @ W' + b'              (folded ActNorm + invertible 1x1 linear)
#   xa, xb = lane halves of x1
#   h  = MLP(xa)                  (depth hidden ReLU layers)
#   zt = h @ W_st + b_st ;  z = zt[:, :half] + 2 ; t = zt[:, half:]
#   s  = sigmoid(z) ;  log s = min(z,0) - log(1+exp(-|z|))   (stable)
#   y  = [xa, (xb + t) * s]       (two direct sub-range stores)
#   per-row sum of log s written as a tiny (tile_m, 1) column
# --------------------------------------------------------------------------
def _make_fused_flow_kernel(depth, half):
    n_in = 5 + 2 * depth  # x, (W', b'), depth*(Wh, bh), (W_st, b_st)

    def kernel(*refs):
        x_ref = refs[0]
        w_ref, b_ref = refs[1], refs[2]
        hidden_refs = refs[3:3 + 2 * depth]
        wst_ref, bst_ref = refs[3 + 2 * depth], refs[4 + 2 * depth]
        y_ref, ls_ref = refs[n_in], refs[n_in + 1]

        # Folded ActNorm + invertible 1x1 linear: a single (C, C) matmul,
        # bf16 operands with f32 MXU accumulation.
        x1 = jnp.dot(x_ref[...], w_ref[...],
                     preferred_element_type=jnp.float32) + b_ref[...]
        xa = x1[:, :half]          # cheap lane slices (sub-128 masked select)
        xb = x1[:, half:]

        # Coupling MLP on xa.
        h = xa.astype(jnp.bfloat16)
        for l in range(depth):
            w = hidden_refs[2 * l][...]
            b = hidden_refs[2 * l + 1][...]
            h = jnp.maximum(
                jnp.dot(h, w, preferred_element_type=jnp.float32) + b, 0.0
            ).astype(jnp.bfloat16)

        # Fused s/t output head: one (hidden, 2*half) matmul, split by lanes.
        zt = jnp.dot(h, wst_ref[...],
                     preferred_element_type=jnp.float32) + bst_ref[...]
        z = zt[:, :half] + 2.0
        t = zt[:, half:]

        # Numerically stable log-sigmoid; rebuild s = sigmoid(z) from the same
        # exp using the (nearly free) EUP reciprocal.
        e = jnp.exp(-jnp.abs(z))
        log_s = jnp.minimum(z, 0.0) - jnp.log(1.0 + e)
        inv = pl.reciprocal(1.0 + e, approx=True)
        s = jnp.where(z >= 0.0, inv, e * inv)
        yb = (xb + t) * s

        # Epilogue: two direct sub-range stores (no concat temporary).
        y_ref[:, :half] = xa.astype(y_ref.dtype)
        y_ref[:, half:] = yb.astype(y_ref.dtype)
        # In-kernel reduction of log(s): only a per-row scalar leaves VMEM.
        ls_ref[...] = jnp.sum(log_s, axis=-1, keepdims=True)

    return kernel


def _fused_flow_call(x_flat, params, depth, half, tile_m):
    """x_flat: (M, C) bf16.  Returns (y bf16 (M, C), row_log_s f32 (M, 1))."""
    M, C = x_flat.shape
    grid = (pl.cdiv(M, tile_m),)          # ragged last block handled by Pallas
    kernel = _make_fused_flow_kernel(depth, half)

    x_spec = pl.BlockSpec((tile_m, C), lambda i: (i, 0))
    # Weights/biases stay resident: constant block index across the grid.
    w_specs = [pl.BlockSpec(p.shape, lambda i: (0, 0)) for p in params]

    y, ls = pl.pallas_call(
        kernel,
        out_shape=(
            jax.ShapeDtypeStruct((M, C), jnp.bfloat16),
            jax.ShapeDtypeStruct((M, 1), jnp.float32),
        ),
        grid=grid,
        in_specs=[x_spec] + w_specs,
        out_specs=(
            pl.BlockSpec((tile_m, C), lambda i: (i, 0)),
            pl.BlockSpec((tile_m, 1), lambda i: (i, 0)),
        ),
        compiler_params=pltpu.CompilerParams(
            dimension_semantics=("parallel",),
        ),
    )(x_flat, *params)
    return y, ls


# --------------------------------------------------------------------------
# Sub-flow parameter holders (deterministic init in-script).
# --------------------------------------------------------------------------
class ActNormFlow:
    def __init__(self, in_channels, hidden_dim, depth, key):
        k1, k2 = jax.random.split(key)
        self.bias = 0.1 * jax.random.normal(k1, (1, in_channels), jnp.float32)
        self.log_scale = 0.05 * jax.random.normal(k2, (1, in_channels), jnp.float32)


class InvertibleLinearFlow:
    def __init__(self, in_channels, hidden_dim, depth, key):
        w0 = jax.random.normal(key, (in_channels, in_channels), jnp.float32)
        q, _ = jnp.linalg.qr(w0)  # orthogonal init (Glow-style)
        self.weight = q


class AffineCouplingFlow:
    def __init__(self, in_channels, hidden_dim, depth, key):
        half = in_channels // 2
        self.half = half
        self.depth = depth
        dims = [half] + [hidden_dim] * depth
        keys = jax.random.split(key, depth + 2)
        self.hidden = []
        for i in range(depth):
            fan_in = dims[i]
            w = jax.random.normal(keys[i], (dims[i], dims[i + 1]), jnp.float32) / jnp.sqrt(
                jnp.float32(fan_in)
            )
            b = jnp.zeros((1, dims[i + 1]), jnp.float32)
            self.hidden.append((w, b))
        fan = dims[-1]
        self.w_s = jax.random.normal(keys[depth], (fan, half), jnp.float32) / jnp.sqrt(
            jnp.float32(fan)
        )
        self.b_s = jnp.zeros((1, half), jnp.float32)
        self.w_t = jax.random.normal(keys[depth + 1], (fan, half), jnp.float32) / jnp.sqrt(
            jnp.float32(fan)
        )
        self.b_t = jnp.zeros((1, half), jnp.float32)


# --------------------------------------------------------------------------
# Flow container: mirrors the PyTorch module's forward semantics, but runs the
# whole (ActNorm -> 1x1 linear -> affine coupling) step in one fused kernel.
# --------------------------------------------------------------------------
class Flow:
    def __init__(self, module_list, in_channels, hidden_dim, hidden_depth, key):
        # TODO(synk): only the canonical [ActNorm, InvertibleLinear, AffineCoupling]
        # step is fused; arbitrary module lists are not supported here.
        assert list(module_list) == [ActNormFlow, InvertibleLinearFlow, AffineCouplingFlow]
        self.in_channels = in_channels
        keys = jax.random.split(key, len(module_list))
        self.flow = [
            module(in_channels, hidden_dim=hidden_dim, depth=hidden_depth, key=k)
            for module, k in zip(module_list, keys)
        ]
        actnorm, invlin, coupling = self.flow
        self.half = coupling.half
        self.depth = coupling.depth

        # Fold ActNorm into the invertible 1x1 linear (once, at init).
        scale = jnp.exp(actnorm.log_scale)                    # (1, C)
        w_fold = scale.reshape(-1, 1) * invlin.weight         # diag(scale) @ W
        b_fold = (actnorm.bias * scale) @ invlin.weight       # (1, C)

        # Fused s/t head: single (hidden, 2*half) weight; z is the first half.
        w_st = jnp.concatenate([coupling.w_s, coupling.w_t], axis=1)   # (H, C)
        b_st = jnp.concatenate([coupling.b_s, coupling.b_t], axis=1)   # (1, C)

        # NOTE: C/half/hidden_dim are far below the 128-lane width here; for
        # real workloads pad the model dims to multiples of 128 (256 on
        # v6e/v7x) so the x/y tiles and matmul N/K dims are lane-dense.
        params = [w_fold.astype(jnp.bfloat16), b_fold]
        for (w, b) in coupling.hidden:
            params += [w.astype(jnp.bfloat16), b]
        params += [w_st.astype(jnp.bfloat16), b_st]
        self.params = params

        # Constant (data-independent) logdet per timestep: ActNorm + slogdet(W).
        _, logabsdet = jnp.linalg.slogdet(invlin.weight)      # tiny CxC, once at init
        self.const_logdet_per_t = jnp.sum(actnorm.log_scale) + logabsdet

        self._fwd = jax.jit(self._forward)

    @staticmethod
    def _pick_tile_m(M):
        # Mem-bound kernel: big tiles amortize the ~0.35us per-grid-step
        # overhead; keep >=2 tiles when rows allow so v7x's two TensorCores
        # both get work.  bf16 tiles -> keep tile_m a multiple of 16.
        if M >= 2048:
            return 1024
        if M >= 32:
            return _round_up(pl.cdiv(M, 2), 16)
        return max(8, _round_up(M, 8))

    def _forward(self, x):
        B, T, C = x.shape
        M = B * T
        # bf16 activations end-to-end; no wrapper pad / slice (Pallas masks the
        # ragged last block and drops out-of-bounds writebacks).
        xf = x.reshape(M, C).astype(jnp.bfloat16)
        tile_m = self._pick_tile_m(M)
        y_flat, ls = _fused_flow_call(xf, tuple(self.params), self.depth, self.half, tile_m)
        y = y_flat.reshape(B, T, C)
        coupling_logdet = ls[:, 0].reshape(B, T).sum(axis=1)
        logdet = coupling_logdet + T * self.const_logdet_per_t
        return y, logdet

    def __call__(self, x, condition=None, reverse=False):
        if not reverse:
            return self._fwd(x)
        # TODO(synk): reverse (inverse) pass of the sub-flows not implemented.
        raise NotImplementedError("reverse pass not implemented")

    # Pure-JAX reference of the same math (same bf16 operand casts) for checking.
    def reference_forward(self, x):
        B, T, C = x.shape
        half, depth = self.half, self.depth
        p = self.params
        xf = x.reshape(B * T, C).astype(jnp.bfloat16)
        w, b = p[0], p[1]
        x1 = jnp.dot(xf, w, preferred_element_type=jnp.float32) + b
        xa, xb = x1[:, :half], x1[:, half:]
        h = xa.astype(jnp.bfloat16)
        for l in range(depth):
            wl, bl = p[2 + 2 * l], p[3 + 2 * l]
            h = jnp.maximum(
                jnp.dot(h, wl, preferred_element_type=jnp.float32) + bl, 0.0
            ).astype(jnp.bfloat16)
        wst, bst = p[2 + 2 * depth], p[3 + 2 * depth]
        zt = jnp.dot(h, wst, preferred_element_type=jnp.float32) + bst
        z = zt[:, :half] + 2.0
        t = zt[:, half:]
        log_s = jnp.minimum(z, 0.0) - jnp.log1p(jnp.exp(-jnp.abs(z)))
        s = jax.nn.sigmoid(z)
        yb = (xb + t) * s
        y = jnp.concatenate([xa, yb], axis=-1).astype(jnp.bfloat16).reshape(B, T, C)
        logdet = log_s.reshape(B, T, half).sum(axis=(1, 2)) + T * self.const_logdet_per_t
        return y, logdet


# --------------------------------------------------------------------------
if __name__ == "__main__":
    B, T, C = 2, 8, 32
    hidden_dim, hidden_depth = 64, 2

    key = jax.random.PRNGKey(0)
    k_params, k_x = jax.random.split(key)

    flow = Flow(
        module_list=[ActNormFlow, InvertibleLinearFlow, AffineCouplingFlow],
        in_channels=C,
        hidden_dim=hidden_dim,
        hidden_depth=hidden_depth,
        key=k_params,
    )

    x = jax.random.normal(k_x, (B, T, C), jnp.float32)

    y, logdet = flow(x)
    y = jax.block_until_ready(y)
    logdet = jax.block_until_ready(logdet)

    assert y.shape == (B, T, C)
    assert logdet.shape == (B,)
    y_f32 = y.astype(jnp.float32)
    assert bool(jnp.all(jnp.isfinite(y_f32))) and bool(jnp.all(jnp.isfinite(logdet)))

    y_ref, logdet_ref = flow.reference_forward(x)
    assert bool(jnp.allclose(y_f32, y_ref.astype(jnp.float32), rtol=2e-2, atol=2e-2))
    assert bool(jnp.allclose(logdet, logdet_ref, rtol=2e-2, atol=2e-2))

    print("KERNEL_OK")
</pallas_src>

<mosaic_0001>
module attributes {stable_mosaic.version = 11 : i64} {
  func.func @kernel(%arg0: i32, %arg1: memref<16x32xbf16, #tpu.memory_space<vmem>>, %arg2: memref<32x32xbf16, #tpu.memory_space<vmem>>, %arg3: memref<1x32xf32, #tpu.memory_space<vmem>>, %arg4: memref<16x64xbf16, #tpu.memory_space<vmem>>, %arg5: memref<1x64xf32, #tpu.memory_space<vmem>>, %arg6: memref<64x64xbf16, #tpu.memory_space<vmem>>, %arg7: memref<1x64xf32, #tpu.memory_space<vmem>>, %arg8: memref<64x32xbf16, #tpu.memory_space<vmem>>, %arg9: memref<1x32xf32, #tpu.memory_space<vmem>>, %arg10: memref<16x32xbf16, #tpu.memory_space<vmem>>, %arg11: memref<16x1xf32, #tpu.memory_space<vmem>>) attributes {dimension_semantics = [#tpu.dimension_semantics<parallel>], iteration_bounds = array<i64: 1>, scalar_prefetch = 0 : i64, scratch_operands = 0 : i64, tpu.core_type = #tpu.core_type<tc>, window_params = [{transform_indices = @transform_0, window_bounds = array<i64: 16, 32>}, {pipeline_mode = #tpu.pipeline_mode<synchronous>, transform_indices = @transform_1, window_bounds = array<i64: 32, 32>}, {pipeline_mode = #tpu.pipeline_mode<synchronous>, transform_indices = @transform_2, window_bounds = array<i64: 1, 32>}, {pipeline_mode = #tpu.pipeline_mode<synchronous>, transform_indices = @transform_3, window_bounds = array<i64: 16, 64>}, {pipeline_mode = #tpu.pipeline_mode<synchronous>, transform_indices = @transform_4, window_bounds = array<i64: 1, 64>}, {pipeline_mode = #tpu.pipeline_mode<synchronous>, transform_indices = @transform_5, window_bounds = array<i64: 64, 64>}, {pipeline_mode = #tpu.pipeline_mode<synchronous>, transform_indices = @transform_6, window_bounds = array<i64: 1, 64>}, {pipeline_mode = #tpu.pipeline_mode<synchronous>, transform_indices = @transform_7, window_bounds = array<i64: 64, 32>}, {pipeline_mode = #tpu.pipeline_mode<synchronous>, transform_indices = @transform_8, window_bounds = array<i64: 1, 32>}, {transform_indices = @transform_9, window_bounds = array<i64: 16, 32>}, {transform_indices = @transform_10, window_bounds = array<i64: 16, 1>}]} {
    %c0 = arith.constant 0 : index
    %c0_0 = arith.constant 0 : index
    %0 = vector.load %arg1[%c0, %c0_0] : memref<16x32xbf16, #tpu.memory_space<vmem>>, vector<16x32xbf16>
    %c0_1 = arith.constant 0 : index
    %c0_2 = arith.constant 0 : index
    %1 = vector.load %arg2[%c0_1, %c0_2] : memref<32x32xbf16, #tpu.memory_space<vmem>>, vector<32x32xbf16>
    %cst = arith.constant dense<0.000000e+00> : vector<16x32xf32>
    %2 = tpu.matmul %0, %1, %cst {dimension_numbers = #tpu.dot_dimension_numbers<[1], [0], [0], [1], [0, 0, 1, 1], [], []>} : vector<16x32xbf16>, vector<32x32xbf16>, vector<16x32xf32> -> vector<16x32xf32>
    %c0_3 = arith.constant 0 : index
    %c0_4 = arith.constant 0 : index
    %3 = vector.load %arg3[%c0_3, %c0_4] : memref<1x32xf32, #tpu.memory_space<vmem>>, vector<1x32xf32>
    %4 = vector.broadcast %3 : vector<1x32xf32> to vector<16x32xf32>
    %5 = arith.addf %2, %4 : vector<16x32xf32>
    %6 = vector.extract_strided_slice %5 {offsets = [0, 0], sizes = [16, 16], strides = [1, 1]} : vector<16x32xf32> to vector<16x16xf32>
    %7 = vector.extract_strided_slice %5 {offsets = [0, 16], sizes = [16, 16], strides = [1, 1]} : vector<16x32xf32> to vector<16x16xf32>
    %8 = arith.truncf %6 : vector<16x16xf32> to vector<16x16xbf16>
    %c0_5 = arith.constant 0 : index
    %c0_6 = arith.constant 0 : index
    %9 = vector.load %arg4[%c0_5, %c0_6] : memref<16x64xbf16, #tpu.memory_space<vmem>>, vector<16x64xbf16>
    %c0_7 = arith.constant 0 : index
    %c0_8 = arith.constant 0 : index
    %10 = vector.load %arg5[%c0_7, %c0_8] : memref<1x64xf32, #tpu.memory_space<vmem>>, vector<1x64xf32>
    %cst_9 = arith.constant dense<0.000000e+00> : vector<16x64xf32>
    %11 = tpu.matmul %8, %9, %cst_9 {dimension_numbers = #tpu.dot_dimension_numbers<[1], [0], [0], [1], [0, 0, 1, 1], [], []>} : vector<16x16xbf16>, vector<16x64xbf16>, vector<16x64xf32> -> vector<16x64xf32>
    %12 = vector.broadcast %10 : vector<1x64xf32> to vector<16x64xf32>
    %13 = arith.addf %11, %12 : vector<16x64xf32>
    %cst_10 = arith.constant 0.000000e+00 : f32
    %14 = vector.broadcast %cst_10 : f32 to vector<16x64xf32>
    %15 = arith.maximumf %13, %14 : vector<16x64xf32>
    %16 = arith.truncf %15 : vector<16x64xf32> to vector<16x64xbf16>
    %c0_11 = arith.constant 0 : index
    %c0_12 = arith.constant 0 : index
    %17 = vector.load %arg6[%c0_11, %c0_12] : memref<64x64xbf16, #tpu.memory_space<vmem>>, vector<64x64xbf16>
    %c0_13 = arith.constant 0 : index
    %c0_14 = arith.constant 0 : index
    %18 = vector.load %arg7[%c0_13, %c0_14] : memref<1x64xf32, #tpu.memory_space<vmem>>, vector<1x64xf32>
    %cst_15 = arith.constant dense<0.000000e+00> : vector<16x64xf32>
    %19 = tpu.matmul %16, %17, %cst_15 {dimension_numbers = #tpu.dot_dimension_numbers<[1], [0], [0], [1], [0, 0, 1, 1], [], []>} : vector<16x64xbf16>, vector<64x64xbf16>, vector<16x64xf32> -> vector<16x64xf32>
    %20 = vector.broadcast %18 : vector<1x64xf32> to vector<16x64xf32>
    %21 = arith.addf %19, %20 : vector<16x64xf32>
    %cst_16 = arith.constant 0.000000e+00 : f32
    %22 = vector.broadcast %cst_16 : f32 to vector<16x64xf32>
    %23 = arith.maximumf %21, %22 : vector<16x64xf32>
    %24 = arith.truncf %23 : vector<16x64xf32> to vector<16x64xbf16>
    %c0_17 = arith.constant 0 : index
    %c0_18 = arith.constant 0 : index
    %25 = vector.load %arg8[%c0_17, %c0_18] : memref<64x32xbf16, #tpu.memory_space<vmem>>, vector<64x32xbf16>
    %cst_19 = arith.constant dense<0.000000e+00> : vector<16x32xf32>
    %26 = tpu.matmul %24, %25, %cst_19 {dimension_numbers = #tpu.dot_dimension_numbers<[1], [0], [0], [1], [0, 0, 1, 1], [], []>} : vector<16x64xbf16>, vector<64x32xbf16>, vector<16x32xf32> -> vector<16x32xf32>
    %c0_20 = arith.constant 0 : index
    %c0_21 = arith.constant 0 : index
    %27 = vector.load %arg9[%c0_20, %c0_21] : memref<1x32xf32, #tpu.memory_space<vmem>>, vector<1x32xf32>
    %28 = vector.broadcast %27 : vector<1x32xf32> to vector<16x32xf32>
    %29 = arith.addf %26, %28 : vector<16x32xf32>
    %30 = vector.extract_strided_slice %29 {offsets = [0, 0], sizes = [16, 16], strides = [1, 1]} : vector<16x32xf32> to vector<16x16xf32>
    %cst_22 = arith.constant 2.000000e+00 : f32
    %31 = vector.broadcast %cst_22 : f32 to vector<16x16xf32>
    %32 = arith.addf %30, %31 : vector<16x16xf32>
    %33 = vector.extract_strided_slice %29 {offsets = [0, 16], sizes = [16, 16], strides = [1, 1]} : vector<16x32xf32> to vector<16x16xf32>
    %34 = math.absf %32 : vector<16x16xf32>
    %cst_23 = arith.constant 0.000000e+00 : f32
    %35 = vector.broadcast %cst_23 : f32 to vector<16x16xf32>
    %36 = arith.subf %35, %34 : vector<16x16xf32>
    %37 = math.exp %36 : vector<16x16xf32>
    %cst_24 = arith.constant 0.000000e+00 : f32
    %38 = vector.broadcast %cst_24 : f32 to vector<16x16xf32>
    %39 = arith.minimumf %32, %38 : vector<16x16xf32>
    %cst_25 = arith.constant 1.000000e+00 : f32
    %40 = vector.broadcast %cst_25 : f32 to vector<16x16xf32>
    %41 = arith.addf %40, %37 : vector<16x16xf32>
    %42 = math.log %41 : vector<16x16xf32>
    %43 = arith.subf %39, %42 : vector<16x16xf32>
    %cst_26 = arith.constant 1.000000e+00 : f32
    %44 = vector.broadcast %cst_26 : f32 to vector<16x16xf32>
    %45 = arith.addf %44, %37 : vector<16x16xf32>
    %46 = tpu.reciprocal %45 {approx = true} : vector<16x16xf32> -> vector<16x16xf32>
    %cst_27 = arith.constant 0.000000e+00 : f32
    %47 = vector.broadcast %cst_27 : f32 to vector<16x16xf32>
    %48 = arith.cmpf oge, %32, %47 : vector<16x16xf32>
    %49 = arith.mulf %37, %46 : vector<16x16xf32>
    %50 = arith.select %48, %46, %49 : vector<16x16xi1>, vector<16x16xf32>
    %51 = arith.addf %7, %33 : vector<16x16xf32>
    %52 = arith.mulf %51, %50 : vector<16x16xf32>
    %53 = arith.truncf %6 : vector<16x16xf32> to vector<16x16xbf16>
    %c0_28 = arith.constant 0 : index
    %c0_29 = arith.constant 0 : index
    %54 = vector.load %arg10[%c0_28, %c0_29] : memref<16x32xbf16, #tpu.memory_space<vmem>>, vector<16x16xbf16>
    tpu.vector_store %arg10[%c0_28, %c0_29], %53 {strides = array<i32>} : memref<16x32xbf16, #tpu.memory_space<vmem>>, vector<16x16xbf16>,
    %55 = arith.truncf %52 : vector<16x16xf32> to vector<16x16xbf16>
    %c0_30 = arith.constant 0 : index
    %c16 = arith.constant 16 : index
    %56 = vector.load %arg10[%c0_30, %c16] : memref<16x32xbf16, #tpu.memory_space<vmem>>, vector<16x16xbf16>
    tpu.vector_store %arg10[%c0_30, %c16], %55 {strides = array<i32>} : memref<16x32xbf16, #tpu.memory_space<vmem>>, vector<16x16xbf16>,
    %cst_31 = arith.constant dense<0.000000e+00> : vector<16xf32>
    %57 = vector.multi_reduction <add>, %43, %cst_31 [1] : vector<16x16xf32> to vector<16xf32>
    %58 = vector.shape_cast %57 : vector<16xf32> to vector<16x1xf32>
    %c0_32 = arith.constant 0 : index
    %c0_33 = arith.constant 0 : index
    %59 = vector.load %arg11[%c0_32, %c0_33] : memref<16x1xf32, #tpu.memory_space<vmem>>, vector<16x1xf32>
    tpu.vector_store %arg11[%c0_32, %c0_33], %58 {strides = array<i32>} : memref<16x1xf32, #tpu.memory_space<vmem>>, vector<16x1xf32>,
    return
  }
  func.func @transform_0(%arg0: i32) -> (i32, i32) {
    %c0_i32 = arith.constant 0 : i32
    %c0_i32_0 = arith.constant 0 : i32
    return %arg0, %c0_i32 : i32, i32
  }
  func.func @transform_1(%arg0: i32) -> (i32, i32) {
    %c0_i32 = arith.constant 0 : i32
    %c0_i32_0 = arith.constant 0 : i32
    %c0_i32_1 = arith.constant 0 : i32
    return %c0_i32, %c0_i32_0 : i32, i32
  }
  func.func @transform_2(%arg0: i32) -> (i32, i32) {
    %c0_i32 = arith.constant 0 : i32
    %c0_i32_0 = arith.constant 0 : i32
    %c0_i32_1 = arith.constant 0 : i32
    return %c0_i32, %c0_i32_0 : i32, i32
  }
  func.func @transform_3(%arg0: i32) -> (i32, i32) {
    %c0_i32 = arith.constant 0 : i32
    %c0_i32_0 = arith.constant 0 : i32
    %c0_i32_1 = arith.constant 0 : i32
    return %c0_i32, %c0_i32_0 : i32, i32
  }
  func.func @transform_4(%arg0: i32) -> (i32, i32) {
    %c0_i32 = arith.constant 0 : i32
    %c0_i32_0 = arith.constant 0 : i32
    %c0_i32_1 = arith.constant 0 : i32
    return %c0_i32, %c0_i32_0 : i32, i32
  }
  func.func @transform_5(%arg0: i32) -> (i32, i32) {
    %c0_i32 = arith.constant 0 : i32
    %c0_i32_0 = arith.constant 0 : i32
    %c0_i32_1 = arith.constant 0 : i32
    return %c0_i32, %c0_i32_0 : i32, i32
  }
  func.func @transform_6(%arg0: i32) -> (i32, i32) {
    %c0_i32 = arith.constant 0 : i32
    %c0_i32_0 = arith.constant 0 : i32
    %c0_i32_1 = arith.constant 0 : i32
    return %c0_i32, %c0_i32_0 : i32, i32
  }
  func.func @transform_7(%arg0: i32) -> (i32, i32) {
    %c0_i32 = arith.constant 0 : i32
    %c0_i32_0 = arith.constant 0 : i32
    %c0_i32_1 = arith.constant 0 : i32
    return %c0_i32, %c0_i32_0 : i32, i32
  }
  func.func @transform_8(%arg0: i32) -> (i32, i32) {
    %c0_i32 = arith.constant 0 : i32
    %c0_i32_0 = arith.constant 0 : i32
    %c0_i32_1 = arith.constant 0 : i32
    return %c0_i32, %c0_i32_0 : i32, i32
  }
  func.func @transform_9(%arg0: i32) -> (i32, i32) {
    %c0_i32 = arith.constant 0 : i32
    %c0_i32_0 = arith.constant 0 : i32
    return %arg0, %c0_i32 : i32, i32
  }
  func.func @transform_10(%arg0: i32) -> (i32, i32) {
    %c0_i32 = arith.constant 0 : i32
    %c0_i32_0 = arith.constant 0 : i32
    return %arg0, %c0_i32 : i32, i32
  }
}

</mosaic_0001>

<llo_original>
// kernel: squeeze.1
$region0: #{squeeze.1}
  %s0 = inlined_call_operand.vmem [shape: f32[16], index: 0, kind: input, shape index: {}]
  %s1 = inlined_call_operand.vmem [shape: f32[2,8], index: 1, kind: output, shape index: {}]
  $region1: #{squeeze.1} parent=0
    #allocation0 [shape = 'u8[4096]{0}', space=vmem, size = 0x1000, scoped, tag = 'scoped mem for output reshape']
    #allocation1 [shape = 'u8[4096]{0}', space=vmem, size = 0x1000, scoped, tag = 'scoped mem for input reshape']
    %s3 = sshll.u32 1, 1
    %s4 = ssub.s32 %s3, 1
    %v5 = vld [vmem:[%s0] sm:%s4]
    %6 = vst [vmem:[#allocation1] sm:%s4] %v5
    %v7 = vld [vmem:[#allocation1] sm:$0x1]
    %vm8 = vcmask 64512
    %9 = vst.msk [vmem:[#allocation0] sm:$0x1] %vm8, %v7
    %v10 = vld [vmem:[#allocation1] sm:$0x1]
    %11 = vrot.lane.b32.xlu0 %v10, 120
    %v12 = vpop.permute.xlu0 %11
    %vm13 = vcmask 64512
    %s14 = scalar_lea.vmem [#allocation0], 1
    %15 = vst.msk [vmem:[%s14] sm:$0x1] %vm13, %v12
    %s17 = sshll.u32 1, 2
    %s18 = ssub.s32 %s17, 1
    %v20 = vld [vmem:[#allocation0] sm:%s18]
    %s21 = sshll.u32 1, 2
    %s22 = ssub.s32 %s21, 1
    %23 = vst [vmem:[%s1] sm:%s22] %v20

// kernel: _forward.1
$region0: #{_forward.1}
  #allocation0 [shape = 'u32[]', space=smem, size = 0x4, offset = 0x4, fixed_abs, tag = 'smem constant byte address 0x4 - core index']
  #allocation1 [shape = 'u32[144,128]{1,0:T(1,128)}', space=vmem, size = 0x12000, scoped, tag = 'internal scratch']
  %s0 = inlined_call_operand.vmem [shape: bf16[16,32], index: 0, kind: input, shape index: {}]
  %s1 = inlined_call_operand.hbm [shape: bf16[32,32], index: 1, kind: input, shape index: {}]
  %s2 = inlined_call_operand.hbm [shape: f32[1,32], index: 2, kind: input, shape index: {}]
  %s3 = inlined_call_operand.vmem [shape: bf16[16,64], index: 3, kind: input, shape index: {}]
  %s4 = inlined_call_operand.vmem [shape: f32[1,64], index: 4, kind: input, shape index: {}, may-alias: {4,6}]
  %s5 = inlined_call_operand.hbm [shape: bf16[64,64], index: 5, kind: input, shape index: {}]
  %s6 = inlined_call_operand.vmem [shape: f32[1,64], index: 6, kind: input, shape index: {}, may-alias: {4,6}]
  %s7 = inlined_call_operand.vmem [shape: bf16[64,32], index: 7, kind: input, shape index: {}]
  %s8 = inlined_call_operand.vmem [shape: f32[1,32], index: 8, kind: input, shape index: {}]
  %s9 = inlined_call_operand.hbm [shape: bf16[16,32], index: 9, kind: output, shape index: {0}]
  %s10 = inlined_call_operand.vmem [shape: f32[16,1], index: 10, kind: output, shape index: {1}]
  %11 = xla_tuple %s9, %s10
  %s12 = sld [smem:[#allocation0]]
  $region66: #{_forward.1} parent=0
    _
  %s14 = ssub.s32 1, %s12
  %s15 = scalar_select 0, %s14, %s12
  $region1: #{_forward.1} parent=0
    #allocation2 [shape = 'u8[8192]{0}', space=vmem, size = 0x2000, scoped, tag = 'input window, operand 1, single buffered']
    #allocation3 [shape = 's32[1]{0}', space=sflag, size = 0x4, scoped, tag = 'scoped memory for _forward.1']
    #allocation4 [shape = 's32[1]{0}', space=sflag, size = 0x4, scoped, tag = 'scoped memory for _forward.1']
    #allocation5 [shape = 'u8[512]{0}', space=vmem, size = 0x400, scoped, tag = 'input window, operand 2, single buffered']
    #allocation6 [shape = 's32[1]{0}', space=sflag, size = 0x4, scoped, tag = 'scoped memory for _forward.1']
    #allocation7 [shape = 'u8[16384]{0}', space=vmem, size = 0x4000, scoped, tag = 'input window, operand 5, single buffered']
    #allocation8 [shape = 'u8[4096]{0}', space=vmem, size = 0x1000, scoped, tag = 'output window, operand 0, single buffered']
    %16 = vsyncpa [#allocation3], 0
    %17 = vsyncpa [#allocation6], 0
    %18 = vsyncpa [#allocation4], 0
    // Predicated region
    $region2: #{_forward.1} parent=1 // pred_check
      _
    $region3: #{_forward.1} parent=1 // pred_check_branch
      %20 = sbr.rel (0) target = $region5
    $region4: #{_forward.1} parent=1 // pred_region
      _
    $region5: #{_forward.1} parent=1 // pred_fallthru
      _
    // Predicated region
    $region6: #{_forward.1} parent=1 // pred_check
      _
    $region7: #{_forward.1} parent=1 // pred_check_branch
      %22 = sbr.rel (0) target = $region9
    $region8: #{_forward.1} parent=1 // pred_region
      %s24 = ssub.s32 256, 256
      %25 = vsyncadd [#allocation3], %s24
      %s26 = sshll.u32 [#allocation2], 4
      %s27 = int_to_ptr.vmem [resolvable:$true] %s26
      %32 = dma.hbm_to_vmem [thread:$0]  %s1, 256, %s27, [#allocation3], 64, 64, 4
    $region9: #{_forward.1} parent=1 // pred_fallthru
      _
    // Predicated region
    $region10: #{_forward.1} parent=1 // pred_check
      _
    $region11: #{_forward.1} parent=1 // pred_check_branch
      %34 = sbr.rel (0) target = $region13
    $region12: #{_forward.1} parent=1 // pred_region
      %s36 = ssub.s32 16, 16
      %37 = vsyncadd [#allocation6], %s36
      %s39 = sshll.u32 [#allocation5], 4
      %s40 = int_to_ptr.vmem [resolvable:$true] %s39
      %42 = dma.hbm_to_vmem [thread:$0]  %s2, 16, %s40, [#allocation6]
    $region13: #{_forward.1} parent=1 // pred_fallthru
      _
    // Predicated region
    $region14: #{_forward.1} parent=1 // pred_check
      _
    $region15: #{_forward.1} parent=1 // pred_check_branch
      %44 = sbr.rel (0) target = $region17
    $region16: #{_forward.1} parent=1 // pred_region
      _
    $region17: #{_forward.1} parent=1 // pred_fallthru
      _
    // Predicated region
    $region18: #{_forward.1} parent=1 // pred_check
      _
    $region19: #{_forward.1} parent=1 // pred_check_branch
      %46 = sbr.rel (0) target = $region21
    $region20: #{_forward.1} parent=1 // pred_region
      _
    $region21: #{_forward.1} parent=1 // pred_fallthru
      _
    // Predicated region
    $region22: #{_forward.1} parent=1 // pred_check
      _
    $region23: #{_forward.1} parent=1 // pred_check_branch
      %48 = sbr.rel (0) target = $region25
    $region24: #{_forward.1} parent=1 // pred_region
      %s50 = ssub.s32 512, 512
      %51 = vsyncadd [#allocation6], %s50
      %s52 = sshll.u32 [#allocation7], 4
      %s53 = int_to_ptr.vmem [resolvable:$true] %s52
      %58 = dma.hbm_to_vmem [thread:$0]  %s5, 512, %s53, [#allocation6], 64, 64, 4
    $region25: #{_forward.1} parent=1 // pred_fallthru
      _
    // Predicated region
    $region26: #{_forward.1} parent=1 // pred_check
      _
    $region27: #{_forward.1} parent=1 // pred_check_branch
      %60 = sbr.rel (0) target = $region29
    $region28: #{_forward.1} parent=1 // pred_region
      _
    $region29: #{_forward.1} parent=1 // pred_fallthru
      _
    // Predicated region
    $region30: #{_forward.1} parent=1 // pred_check
      _
    $region31: #{_forward.1} parent=1 // pred_check_branch
      %62 = sbr.rel (0) target = $region33
    $region32: #{_forward.1} parent=1 // pred_region
      _
    $region33: #{_forward.1} parent=1 // pred_fallthru
      _
    // Predicated region
    $region34: #{_forward.1} parent=1 // pred_check
      _
    $region35: #{_forward.1} parent=1 // pred_check_branch
      %64 = sbr.rel (0) target = $region37
    $region36: #{_forward.1} parent=1 // pred_region
      _
    $region37: #{_forward.1} parent=1 // pred_fallthru
      _
    // Predicated region
    $region38: #{_forward.1} parent=1 // pred_check
      _
    $region39: #{_forward.1} parent=1 // pred_check_branch
      %66 = sbr.rel (0) target = $region41
    $region40: #{_forward.1} parent=1 // pred_region
      %67 = dma.done [#allocation3], 256
    $region41: #{_forward.1} parent=1 // pred_fallthru
      _
    // Predicated region
    $region42: #{_forward.1} parent=1 // pred_check
      _
    $region43: #{_forward.1} parent=1 // pred_check_branch
      %69 = sbr.rel (0) target = $region45
    $region44: #{_forward.1} parent=1 // pred_region
      %70 = dma.done [#allocation6], 16
    $region45: #{_forward.1} parent=1 // pred_fallthru
      _
    // Predicated region
    $region46: #{_forward.1} parent=1 // pred_check
      _
    $region47: #{_forward.1} parent=1 // pred_check_branch
      %72 = sbr.rel (0) target = $region49
    $region48: #{_forward.1} parent=1 // pred_region
      %73 = dma.done [#allocation6], 512
    $region49: #{_forward.1} parent=1 // pred_fallthru
      _
    %v75 = vld [vmem:[%s0] sm:$0xf]
    %v76 = vld [vmem:[%s0 + $0x4] sm:$0xf]
    %v77 = vld [vmem:[#allocation2] sm:$0xf]
    %v78 = vld [vmem:[#allocation2 + $0x4] sm:$0xf]
    %v79 = vld [vmem:[#allocation2 + $0x8] sm:$0xf]
    %v80 = vld [vmem:[#allocation2 + $0xc] sm:$0xf]
    %v81 = vld [vmem:[#allocation5] sm:$0x1]
    %v83 = vlaneseq
    %v84 = vshrl.u32 %v83, 7
    %v85 = vsub.s32 0, %v84
    %v86 = vrot.slane %v81, %v85
    %v90 = vunpack.c.l.b16 %v75
    %v91 = vunpack.c.l.b16 %v76
    %v92 = vpack.c.b16 %v91, %v90
    %v97 = vunpack.c.l.b16 %v77
    %v98 = vunpack.c.l.b16 %v78
    %v99 = vunpack.c.l.b16 %v79
    %v100 = vunpack.c.l.b16 %v80
    %v101 = vpack.c.b16 %v98, %v97
    %v102 = vpack.c.b16 %v100, %v99
    %vm105 = vcmask 261120
    %v107 = vsel %vm105, %v92, 0
    %109 = vmatprep.subr.bf16.mxu0 0
    %110 = vmatpush1.bf16.msra.mxu0 0
    %111 = vmatprep.subr.bf16.mxu0 0
    %112 = vmatpush1.bf16.msra.mxu0 0
    %113 = vmatprep.subr.bf16.mxu0 0
    %114 = vmatpush1.bf16.msra.mxu0 0
    %115 = vmatprep.subr.bf16.mxu0 0
    %116 = vmatpush1.bf16.msra.mxu0 0
    %117 = vmatprep.subr.bf16.mxu0 0
    %118 = vmatpush1.bf16.msra.mxu0 0
    %119 = vmatprep.subr.bf16.mxu0 0
    %120 = vmatpush1.bf16.msra.mxu0 0
    %121 = vmatprep.subr.bf16.mxu0 0
    %122 = vmatpush1.bf16.msra.mxu0 %v102
    %123 = vmatprep.subr.bf16.mxu0 0
    %124 = vmatpush1.bf16.msra.mxu0 %v101
    %125 = vmatprep.subr.bf16.mxu0 0
    %126 = vmatpush2.bf16.msra.mxu0 0
    %127 = vmatprep.subr.bf16.mxu0 0
    %128 = vmatpush2.bf16.msra.mxu0 0
    %129 = vmatprep.subr.bf16.mxu0 0
    %130 = vmatpush2.bf16.msra.mxu0 0
    %131 = vmatprep.subr.bf16.mxu0 0
    %132 = vmatpush2.bf16.msra.mxu0 0
    %133 = vmatprep.subr.bf16.mxu0 0
    %134 = vmatpush2.bf16.msra.mxu0 0
    %135 = vmatprep.subr.bf16.mxu0 0
    %136 = vmatpush2.bf16.msra.mxu0 0
    %137 = vmatprep.subr.bf16.mxu0 0
    %138 = vmatpush2.bf16.msra.mxu0 0
    %139 = vmatprep.subr.bf16.mxu0 0
    %140 = vmatpush2.bf16.msra.mxu0 0
    %141 = vmatprep.mubr.bf16.mxu0 0
    %142 = vmatmul.mubr.bf16.gmra.mxu0 %v107
    %v143 = vpop.f32.mrf.mxu0
    %v144 = vadd.f32 %v86, %v143
    %v145 = vpop.f32.mrf.mxu0
    %v146 = vpop.f32.mrf.mxu0
    %v147 = vadd.f32 %v86, %v146
    %v148 = vpop.f32.mrf.mxu0
    %149 = vdwg.mxu0
    %v150 = vpack.c.bf16 %v147, %v144
    %v151 = vld [vmem:[%s3] sm:$0xf]
    %v152 = vld [vmem:[%s3 + $0x4] sm:$0xf]
    %v153 = vld [vmem:[%s4] sm:$0x1]
    %v155 = vlaneseq
    %v156 = vshrl.u32 %v155, 7
    %v157 = vsub.s32 0, %v156
    %v158 = vrot.slane %v153, %v157
    %v162 = vunpack.c.l.b16 %v151
    %v163 = vunpack.c.l.b16 %v152
    %v164 = vpack.c.b16 %v163, %v162
    %vm166 = vcmask 130048
    %v168 = vsel %vm166, %v150, 0
    %170 = vmatprep.subr.bf16.mxu0 0
    %171 = vmatpush1.bf16.msra.mxu0 0
    %172 = vmatprep.subr.bf16.mxu0 0
    %173 = vmatpush1.bf16.msra.mxu0 0
    %174 = vmatprep.subr.bf16.mxu0 0
    %175 = vmatpush1.bf16.msra.mxu0 0
    %176 = vmatprep.subr.bf16.mxu0 0
    %177 = vmatpush1.bf16.msra.mxu0 0
    %178 = vmatprep.subr.bf16.mxu0 0
    %179 = vmatpush1.bf16.msra.mxu0 0
    %180 = vmatprep.subr.bf16.mxu0 0
    %181 = vmatpush1.bf16.msra.mxu0 0
    %182 = vmatprep.subr.bf16.mxu0 0
    %183 = vmatpush1.bf16.msra.mxu0 0
    %184 = vmatprep.subr.bf16.mxu0 0
    %185 = vmatpush1.bf16.msra.mxu0 %v164
    %186 = vmatprep.subr.bf16.mxu0 0
    %187 = vmatpush2.bf16.msra.mxu0 0
    %188 = vmatprep.subr.bf16.mxu0 0
    %189 = vmatpush2.bf16.msra.mxu0 0
    %190 = vmatprep.subr.bf16.mxu0 0
    %191 = vmatpush2.bf16.msra.mxu0 0
    %192 = vmatprep.subr.bf16.mxu0 0
    %193 = vmatpush2.bf16.msra.mxu0 0
    %194 = vmatprep.subr.bf16.mxu0 0
    %195 = vmatpush2.bf16.msra.mxu0 0
    %196 = vmatprep.subr.bf16.mxu0 0
    %197 = vmatpush2.bf16.msra.mxu0 0
    %198 = vmatprep.subr.bf16.mxu0 0
    %199 = vmatpush2.bf16.msra.mxu0 0
    %200 = vmatprep.subr.bf16.mxu0 0
    %201 = vmatpush2.bf16.msra.mxu0 0
    %202 = vmatprep.mubr.bf16.mxu0 0
    %203 = vmatmul.mubr.bf16.gmra.mxu0 %v168
    %v204 = vpop.f32.mrf.mxu0
    %v205 = vadd.f32 %v158, %v204
    %v206 = vpop.f32.mrf.mxu0
    %v207 = vpop.f32.mrf.mxu0
    %v208 = vadd.f32 %v158, %v207
    %v209 = vpop.f32.mrf.mxu0
    %210 = vdwg.mxu0
    %v211 = vmax.f32 %v205, 0.0
    %v212 = vmax.f32 %v208, 0.0
    %v213 = vpack.c.bf16 %v212, %v211
    %v214 = vld [vmem:[#allocation7] sm:$0xf]
    %v215 = vld [vmem:[#allocation7 + $0x4] sm:$0xf]
    %v216 = vld [vmem:[#allocation7 + $0x8] sm:$0xf]
    %v217 = vld [vmem:[#allocation7 + $0xc] sm:$0xf]
    %v218 = vld [vmem:[#allocation7 + $0x10] sm:$0xf]
    %v219 = vld [vmem:[#allocation7 + $0x14] sm:$0xf]
    %v220 = vld [vmem:[#allocation7 + $0x18] sm:$0xf]
    %v221 = vld [vmem:[#allocation7 + $0x1c] sm:$0xf]
    %v222 = vld [vmem:[%s6] sm:$0x1]
    %v224 = vlaneseq
    %v225 = vshrl.u32 %v224, 7
    %v226 = vsub.s32 0, %v225
    %v227 = vrot.slane %v222, %v226
    %v237 = vunpack.c.l.b16 %v214
    %v238 = vunpack.c.l.b16 %v215
    %v239 = vunpack.c.l.b16 %v216
    %v240 = vunpack.c.l.b16 %v217
    %v241 = vunpack.c.l.b16 %v218
    %v242 = vunpack.c.l.b16 %v219
    %v243 = vunpack.c.l.b16 %v220
    %v244 = vunpack.c.l.b16 %v221
    %v245 = vpack.c.b16 %v238, %v237
    %v246 = vpack.c.b16 %v240, %v239
    %v247 = vpack.c.b16 %v242, %v241
    %v248 = vpack.c.b16 %v244, %v243
    %vm253 = vcmask 523264
    %v255 = vsel %vm253, %v213, 0
    %257 = vmatprep.subr.bf16.mxu0 0
    %258 = vmatpush1.bf16.msra.mxu0 0
    %259 = vmatprep.subr.bf16.mxu0 0
    %260 = vmatpush1.bf16.msra.mxu0 0
    %261 = vmatprep.subr.bf16.mxu0 0
    %262 = vmatpush1.bf16.msra.mxu0 0
    %263 = vmatprep.subr.bf16.mxu0 0
    %264 = vmatpush1.bf16.msra.mxu0 0
    %265 = vmatprep.subr.bf16.mxu0 0
    %266 = vmatpush1.bf16.msra.mxu0 %v248
    %267 = vmatprep.subr.bf16.mxu0 0
    %268 = vmatpush1.bf16.msra.mxu0 %v247
    %269 = vmatprep.subr.bf16.mxu0 0
    %270 = vmatpush1.bf16.msra.mxu0 %v246
    %271 = vmatprep.subr.bf16.mxu0 0
    %272 = vmatpush1.bf16.msra.mxu0 %v245
    %273 = vmatprep.subr.bf16.mxu0 0
    %274 = vmatpush2.bf16.msra.mxu0 0
    %275 = vmatprep.subr.bf16.mxu0 0
    %276 = vmatpush2.bf16.msra.mxu0 0
    %277 = vmatprep.subr.bf16.mxu0 0
    %278 = vmatpush2.bf16.msra.mxu0 0
    %279 = vmatprep.subr.bf16.mxu0 0
    %280 = vmatpush2.bf16.msra.mxu0 0
    %281 = vmatprep.subr.bf16.mxu0 0
    %282 = vmatpush2.bf16.msra.mxu0 0
    %283 = vmatprep.subr.bf16.mxu0 0
    %284 = vmatpush2.bf16.msra.mxu0 0
    %285 = vmatprep.subr.bf16.mxu0 0
    %286 = vmatpush2.bf16.msra.mxu0 0
    %287 = vmatprep.subr.bf16.mxu0 0
    %288 = vmatpush2.bf16.msra.mxu0 0
    %289 = vmatprep.mubr.bf16.mxu0 0
    %290 = vmatmul.mubr.bf16.gmra.mxu0 %v255
    %v291 = vpop.f32.mrf.mxu0
    %v292 = vadd.f32 %v227, %v291
    %v293 = vpop.f32.mrf.mxu0
    %v294 = vpop.f32.mrf.mxu0
    %v295 = vadd.f32 %v227, %v294
    %v296 = vpop.f32.mrf.mxu0
    %297 = vdwg.mxu0
    %v298 = vmax.f32 %v292, 0.0
    %v299 = vmax.f32 %v295, 0.0
    %v300 = vpack.c.bf16 %v299, %v298
    %v301 = vld [vmem:[%s7] sm:$0xf]
    %v302 = vld [vmem:[%s7 + $0x4] sm:$0xf]
    %v303 = vld [vmem:[%s7 + $0x8] sm:$0xf]
    %v304 = vld [vmem:[%s7 + $0xc] sm:$0xf]
    %v305 = vld [vmem:[%s7 + $0x10] sm:$0xf]
    %v306 = vld [vmem:[%s7 + $0x14] sm:$0xf]
    %v307 = vld [vmem:[%s7 + $0x18] sm:$0xf]
    %v308 = vld [vmem:[%s7 + $0x1c] sm:$0xf]
    %v309 = vld [vmem:[%s8] sm:$0x1]
    %v311 = vlaneseq
    %v312 = vshrl.u32 %v311, 7
    %v313 = vsub.s32 0, %v312
    %v314 = vrot.slane %v309, %v313
    %v324 = vunpack.c.l.b16 %v301
    %v325 = vunpack.c.l.b16 %v302
    %v326 = vunpack.c.l.b16 %v303
    %v327 = vunpack.c.l.b16 %v304
    %v328 = vunpack.c.l.b16 %v305
    %v329 = vunpack.c.l.b16 %v306
    %v330 = vunpack.c.l.b16 %v307
    %v331 = vunpack.c.l.b16 %v308
    %v332 = vpack.c.b16 %v325, %v324
    %v333 = vpack.c.b16 %v327, %v326
    %v334 = vpack.c.b16 %v329, %v328
    %v335 = vpack.c.b16 %v331, %v330
    %v341 = vsel %vm253, %v300, 0
    %343 = vmatprep.subr.bf16.mxu0 0
    %344 = vmatpush1.bf16.msra.mxu0 0
    %345 = vmatprep.subr.bf16.mxu0 0
    %346 = vmatpush1.bf16.msra.mxu0 0
    %347 = vmatprep.subr.bf16.mxu0 0
    %348 = vmatpush1.bf16.msra.mxu0 0
    %349 = vmatprep.subr.bf16.mxu0 0
    %350 = vmatpush1.bf16.msra.mxu0 0
    %351 = vmatprep.subr.bf16.mxu0 0
    %352 = vmatpush1.bf16.msra.mxu0 %v335
    %353 = vmatprep.subr.bf16.mxu0 0
    %354 = vmatpush1.bf16.msra.mxu0 %v334
    %355 = vmatprep.subr.bf16.mxu0 0
    %356 = vmatpush1.bf16.msra.mxu0 %v333
    %357 = vmatprep.subr.bf16.mxu0 0
    %358 = vmatpush1.bf16.msra.mxu0 %v332
    %359 = vmatprep.subr.bf16.mxu0 0
    %360 = vmatpush2.bf16.msra.mxu0 0
    %361 = vmatprep.subr.bf16.mxu0 0
    %362 = vmatpush2.bf16.msra.mxu0 0
    %363 = vmatprep.subr.bf16.mxu0 0
    %364 = vmatpush2.bf16.msra.mxu0 0
    %365 = vmatprep.subr.bf16.mxu0 0
    %366 = vmatpush2.bf16.msra.mxu0 0
    %367 = vmatprep.subr.bf16.mxu0 0
    %368 = vmatpush2.bf16.msra.mxu0 0
    %369 = vmatprep.subr.bf16.mxu0 0
    %370 = vmatpush2.bf16.msra.mxu0 0
    %371 = vmatprep.subr.bf16.mxu0 0
    %372 = vmatpush2.bf16.msra.mxu0 0
    %373 = vmatprep.subr.bf16.mxu0 0
    %374 = vmatpush2.bf16.msra.mxu0 0
    %375 = vmatprep.mubr.bf16.mxu0 0
    %376 = vmatmul.mubr.bf16.gmra.mxu0 %v341
    %v377 = vpop.f32.mrf.mxu0
    %v378 = vadd.f32 %v314, %v377
    %v379 = vpop.f32.mrf.mxu0
    %v380 = vpop.f32.mrf.mxu0
    %v381 = vadd.f32 %v314, %v380
    %v382 = vpop.f32.mrf.mxu0
    %383 = vdwg.mxu0
    %v384 = vadd.f32 %v378, 2.0
    %v385 = vadd.f32 %v381, 2.0
    %v386 = vand.u32 2147483647, %v384
    %v387 = vand.u32 2147483647, %v385
    %v388 = vsub.f32 0.0, %v386
    %v389 = vsub.f32 0.0, %v387
    %v390 = vmul.f32 %v388, 1.442695
    %v391 = vpow.pop %v390
    %v392 = vmul.f32 %v389, 1.442695
    %v393 = vpow.pop %v392
    %v394 = vmin.f32 %v384, 0.0
    %v395 = vmin.f32 %v385, 0.0
    %v396 = vadd.f32 %v391, 1.0
    %v397 = vadd.f32 %v393, 1.0
    %v398 = vlog2.pop %v396
    %v399 = vmul.f32 %v398, 0.6931472
    %v400 = vlog2.pop %v397
    %v401 = vmul.f32 %v400, 0.6931472
    %v402 = vsub.f32 %v394, %v399
    %v403 = vsub.f32 %v395, %v401
    %v404 = vrcp.pop %v396
    %v405 = vrcp.pop %v397
    %vm406 = vcmp.ge.f32.partialorder %v384, 0.0
    %vm407 = vcmp.ge.f32.partialorder %v385, 0.0
    %v408 = vmul.f32 %v391, %v404
    %v409 = vmul.f32 %v393, %v405
    %v410 = vsel %vm406, %v404, %v408
    %v411 = vsel %vm407, %v405, %v409
    %v412 = vadd.f32 %v144, %v378
    %v413 = vadd.f32 %v147, %v381
    %416 = vrot.lane.b32.xlu0 %v410, 16
    %v417 = vpop.permute.xlu0 %416
    %418 = vrot.lane.b32.xlu0 %v411, 16
    %v419 = vpop.permute.xlu0 %418
    %v422 = vmul.f32 %v412, %v417
    %v423 = vmul.f32 %v413, %v419
    %v425 = vunpack.c.l.b16 %v150
    %v426 = vunpack.c.h.b16 %v150
    %v427 = vpack.c.b16 %v425, %v425
    %v428 = vpack.c.b16 %v426, %v426
    %vm431 = vcmask 125952
    %432 = vst.msk [vmem:[#allocation8] sm:$0xf] %vm431, %v427
    %433 = vst.msk [vmem:[#allocation8 + $0x4] sm:$0xf] %vm431, %v428
    %v434 = vpack.c.bf16 %v423, %v422
    %v436 = vunpack.c.l.b16 %v434
    %v437 = vunpack.c.h.b16 %v434
    %v438 = vpack.c.b16 %v436, %v436
    %v439 = vpack.c.b16 %v437, %v437
    %vm442 = vcmask 257152
    %443 = vst.msk [vmem:[#allocation8] sm:$0xf] %vm442, %v438
    %444 = vst.msk [vmem:[#allocation8 + $0x4] sm:$0xf] %vm442, %v439
    %v445 = vsel %vm166, %v402, 0.0
    %446 = vadd.xlane.f32.xlu0 %v445
    %v447 = vpop.xlane.xlu0 %446
    %v448 = vsel %vm166, %v403, 0.0
    %449 = vadd.xlane.f32.xlu0 %v448
    %v450 = vpop.xlane.xlu0 %449
    %vm451 = vcmask 7168
    %452 = vst.msk [vmem:[%s10] sm:$0xff] %vm451, %v447
    %453 = vst.msk [vmem:[%s10 + $0x8] sm:$0xff] %vm451, %v450
    // Predicated region
    $region50: #{_forward.1} parent=1 // pred_check
      _
    $region51: #{_forward.1} parent=1 // pred_check_branch
      %455 = sbr.rel (0) target = $region53
    $region52: #{_forward.1} parent=1 // pred_region
      %s457 = ssub.s32 128, 128
      %458 = vsyncadd [#allocation4], %s457
      %s459 = sshll.u32 [#allocation8], 4
      %s460 = int_to_ptr.vmem [resolvable:$true] %s459
      %465 = dma.vmem_to_hbm [thread:$0]  %s460, 128, %s9, [#allocation4], 64, 64, 4
    $region53: #{_forward.1} parent=1 // pred_fallthru
      _
    // Predicated region
    $region54: #{_forward.1} parent=1 // pred_check
      _
    $region55: #{_forward.1} parent=1 // pred_check_branch
      %467 = sbr.rel (0) target = $region57
    $region56: #{_forward.1} parent=1 // pred_region
      _
    $region57: #{_forward.1} parent=1 // pred_fallthru
      _
    // Predicated region
    $region58: #{_forward.1} parent=1 // pred_check
      _
    $region59: #{_forward.1} parent=1 // pred_check_branch
      %469 = sbr.rel (0) target = $region61
    $region60: #{_forward.1} parent=1 // pred_region
      %470 = dma.done [#allocation4], 128
    $region61: #{_forward.1} parent=1 // pred_fallthru
      _
    // Predicated region
    $region62: #{_forward.1} parent=1 // pred_check
      _
    $region63: #{_forward.1} parent=1 // pred_check_branch
      %472 = sbr.rel (0) target = $region65
    $region64: #{_forward.1} parent=1 // pred_region
      _
    $region65: #{_forward.1} parent=1 // pred_fallthru
      _
    %473 = vsyncpa [#allocation3], 1
    %474 = vsyncpa [#allocation6], 1
    %475 = vsyncpa [#allocation4], 1

</llo_original>
